<compile_context>
chip_gen: v7x
topology: tpu7x:2x2x1
jax: 0.10.0
libtpu: 0.0.40
codegen_flags: <defaults>
</compile_context>

<pallas_src>
import jax
import jax.numpy as jnp
from jax.experimental import pallas as pl
from jax.experimental.pallas import tpu as pltpu

OUT_G1, OUT_G2, OUT_T = 9, 9, 1       # gripper1, gripper2, catch-time widths
OUT_PACKED = 128                      # lane-dense packed head width (>= 19)
TM_DEFAULT = 256                      # row tile (sweep 128-512 for large B)


def _round_up(x, m):
    return (x + m - 1) // m * m


def _make_kernel(num_hidden, compute_dtype):
    """Fused MLP kernel. refs = (x, [w_i, b_i]*num_hidden, w_heads, b_heads, out)."""

    def kernel(*refs):
        x_ref = refs[0]
        o_ref = refs[-1]
        h = x_ref[...]                                      # (TM, D_in), bf16
        p = 1
        for _ in range(num_hidden):
            w_ref, b_ref = refs[p], refs[p + 1]
            p += 2
            # MXU matmul in bf16, f32 accumulation; bias + ReLU on the VPU in f32.
            h = jnp.dot(h.astype(compute_dtype), w_ref[...],
                        preferred_element_type=jnp.float32) + b_ref[...]
            h = jnp.maximum(h, 0.0)
            # TODO(synk): nn.Dropout(0.2) is a train-time op; eval-mode forward
            # is identity, so no dropout mask is applied in-kernel.
        wh_ref, bh_ref = refs[p], refs[p + 1]
        # Packed heads: one lane-dense (TM, 128) store instead of 3 masked ones.
        o_ref[...] = jnp.dot(h.astype(compute_dtype), wh_ref[...],
                             preferred_element_type=jnp.float32) + bh_ref[...]

    return kernel


def prediction_mlp_forward(x, params, *, tm=TM_DEFAULT,
                           compute_dtype=jnp.bfloat16):
    """x: [B, input_size] f32 -> (xw_1 [B,9], xw_2 [B,9], obj_catch_t [B,1])."""
    hidden, heads = params["hidden"], params["heads"]
    wg1, bg1, wg2, bg2, wt, bt = heads
    b_rows, d_in = x.shape
    h_last = hidden[-1][0].shape[1]
    n_out = OUT_G1 + OUT_G2 + OUT_T

    # ---- pack the three output heads into one lane-dense [h_last, 128] ----
    w_heads = jnp.concatenate(
        [wg1, wg2, wt, jnp.zeros((h_last, OUT_PACKED - n_out), jnp.float32)],
        axis=1)
    b_heads = jnp.concatenate(
        [bg1.reshape(1, -1), bg2.reshape(1, -1), bt.reshape(1, -1),
         jnp.zeros((1, OUT_PACKED - n_out), jnp.float32)], axis=1)

    # ---- row tiling: clamp TM to the 8-aligned batch, pad batch to TM mult ----
    tm = min(tm, _round_up(b_rows, 8))
    b_pad = _round_up(b_rows, tm)
    x_p = x if b_pad == b_rows else jnp.pad(x, ((0, b_pad - b_rows), (0, 0)))
    x_p = x_p.astype(compute_dtype)                 # bf16 input: half HBM read

    flat_inputs = [x_p]
    in_specs = [pl.BlockSpec((tm, d_in), lambda i: (i, 0))]
    for (w, b) in hidden:
        wc = w.astype(compute_dtype)
        flat_inputs += [wc, b]
        in_specs += [pl.BlockSpec(wc.shape, lambda i: (0, 0)),
                     pl.BlockSpec(b.shape, lambda i: (0, 0))]
    wh = w_heads.astype(compute_dtype)
    flat_inputs += [wh, b_heads]
    in_specs += [pl.BlockSpec(wh.shape, lambda i: (0, 0)),
                 pl.BlockSpec(b_heads.shape, lambda i: (0, 0))]

    dims = [d_in] + [w.shape[1] for (w, _) in hidden] + [OUT_PACKED]
    flops = 2 * b_pad * sum(a * b for a, b in zip(dims[:-1], dims[1:]))
    bytes_accessed = (x_p.size * x_p.dtype.itemsize
                      + b_pad * OUT_PACKED * 4
                      + sum(a.size * a.dtype.itemsize for a in flat_inputs[1:]))

    out_padded = pl.pallas_call(
        _make_kernel(len(hidden), compute_dtype),
        out_shape=jax.ShapeDtypeStruct((b_pad, OUT_PACKED), jnp.float32),
        grid_spec=pltpu.PrefetchScalarGridSpec(
            num_scalar_prefetch=0,
            grid=(b_pad // tm,),
            in_specs=in_specs,
            out_specs=pl.BlockSpec((tm, OUT_PACKED), lambda i: (i, 0)),
        ),
        compiler_params=pltpu.CompilerParams(
            dimension_semantics=("parallel",)),
        cost_estimate=pl.CostEstimate(
            flops=int(flops), transcendentals=0,
            bytes_accessed=int(bytes_accessed)),
    )(*flat_inputs)

    out = out_padded[:b_rows]
    xw_1 = out[:, :OUT_G1]
    xw_2 = out[:, OUT_G1:OUT_G1 + OUT_G2]
    obj_catch_t = out[:, OUT_G1 + OUT_G2:OUT_G1 + OUT_G2 + OUT_T]
    return xw_1, xw_2, obj_catch_t


# ------------------------- pure-JAX reference ---------------------------------
def prediction_mlp_reference(x, params, compute_dtype=jnp.bfloat16):
    hidden, heads = params["hidden"], params["heads"]
    wg1, bg1, wg2, bg2, wt, bt = heads
    h = x
    for (w, b) in hidden:
        h = jnp.dot(h.astype(compute_dtype), w.astype(compute_dtype),
                    preferred_element_type=jnp.float32) + b
        h = jnp.maximum(h, 0.0)
    hc = h.astype(compute_dtype)
    xw_1 = jnp.dot(hc, wg1.astype(compute_dtype),
                   preferred_element_type=jnp.float32) + bg1
    xw_2 = jnp.dot(hc, wg2.astype(compute_dtype),
                   preferred_element_type=jnp.float32) + bg2
    t = jnp.dot(hc, wt.astype(compute_dtype),
                preferred_element_type=jnp.float32) + bt
    return xw_1, xw_2, t


# ----------------------------- parameter init ---------------------------------
def init_params(key, input_size, hidden_sizes):
    hidden = []
    d = input_size
    for hs in hidden_sizes:
        key, kw, kb = jax.random.split(key, 3)
        bound = 1.0 / float(d) ** 0.5
        w = jax.random.uniform(kw, (d, hs), jnp.float32, -bound, bound)
        b = jax.random.uniform(kb, (1, hs), jnp.float32, -bound, bound)
        hidden.append((w, b))
        d = hs
    heads = []
    bound = 1.0 / float(d) ** 0.5
    for out_dim in (OUT_G1, OUT_G2, OUT_T):
        key, kw, kb = jax.random.split(key, 3)
        heads.append(jax.random.uniform(kw, (d, out_dim), jnp.float32, -bound, bound))
        heads.append(jax.random.uniform(kb, (out_dim,), jnp.float32, -bound, bound))
    return {"hidden": hidden, "heads": tuple(heads)}


if __name__ == "__main__":
    key = jax.random.PRNGKey(0)
    B = 16
    INPUT_SIZE = 32
    HIDDEN_SIZES = (64, 32)

    kp, kx = jax.random.split(key)
    params = init_params(kp, INPUT_SIZE, HIDDEN_SIZES)
    x = jax.random.normal(kx, (B, INPUT_SIZE), jnp.float32)

    xw_1, xw_2, obj_catch_t = prediction_mlp_forward(x, params)
    jax.block_until_ready((xw_1, xw_2, obj_catch_t))

    assert xw_1.shape == (B, OUT_G1)
    assert xw_2.shape == (B, OUT_G2)
    assert obj_catch_t.shape == (B, OUT_T)

    # Numerical check against a pure-JAX reference using the same bf16 compute
    # dtype (f32 accumulation) as the kernel.
    r1, r2, rt = prediction_mlp_reference(x, params)
    for got, want in ((xw_1, r1), (xw_2, r2), (obj_catch_t, rt)):
        err = float(jnp.max(jnp.abs(got - want)))
        assert err < 1e-2, f"max abs err {err}"

    print("KERNEL_OK")
</pallas_src>

<mosaic_0001>
module attributes {stable_mosaic.version = 11 : i64} {
  func.func @kernel(%arg0: i32, %arg1: memref<16x32xbf16, #tpu.memory_space<vmem>>, %arg2: memref<32x64xbf16, #tpu.memory_space<vmem>>, %arg3: memref<1x64xf32, #tpu.memory_space<vmem>>, %arg4: memref<64x32xbf16, #tpu.memory_space<vmem>>, %arg5: memref<1x32xf32, #tpu.memory_space<vmem>>, %arg6: memref<32x128xbf16, #tpu.memory_space<vmem>>, %arg7: memref<1x128xf32, #tpu.memory_space<vmem>>, %arg8: memref<16x128xf32, #tpu.memory_space<vmem>>) attributes {dimension_semantics = [#tpu.dimension_semantics<parallel>], iteration_bounds = array<i64: 1>, scalar_prefetch = 0 : i64, scratch_operands = 0 : i64, tpu.core_type = #tpu.core_type<tc>, window_params = [{transform_indices = @transform_0, window_bounds = array<i64: 16, 32>}, {pipeline_mode = #tpu.pipeline_mode<synchronous>, transform_indices = @transform_1, window_bounds = array<i64: 32, 64>}, {pipeline_mode = #tpu.pipeline_mode<synchronous>, transform_indices = @transform_2, window_bounds = array<i64: 1, 64>}, {pipeline_mode = #tpu.pipeline_mode<synchronous>, transform_indices = @transform_3, window_bounds = array<i64: 64, 32>}, {pipeline_mode = #tpu.pipeline_mode<synchronous>, transform_indices = @transform_4, window_bounds = array<i64: 1, 32>}, {pipeline_mode = #tpu.pipeline_mode<synchronous>, transform_indices = @transform_5, window_bounds = array<i64: 32, 128>}, {pipeline_mode = #tpu.pipeline_mode<synchronous>, transform_indices = @transform_6, window_bounds = array<i64: 1, 128>}, {transform_indices = @transform_7, window_bounds = array<i64: 16, 128>}]} {
    %c0 = arith.constant 0 : index
    %c0_0 = arith.constant 0 : index
    %0 = vector.load %arg1[%c0, %c0_0] : memref<16x32xbf16, #tpu.memory_space<vmem>>, vector<16x32xbf16>
    %c0_1 = arith.constant 0 : index
    %c0_2 = arith.constant 0 : index
    %1 = vector.load %arg2[%c0_1, %c0_2] : memref<32x64xbf16, #tpu.memory_space<vmem>>, vector<32x64xbf16>
    %cst = arith.constant dense<0.000000e+00> : vector<16x64xf32>
    %2 = tpu.matmul %0, %1, %cst {dimension_numbers = #tpu.dot_dimension_numbers<[1], [0], [0], [1], [0, 0, 1, 1], [], []>} : vector<16x32xbf16>, vector<32x64xbf16>, vector<16x64xf32> -> vector<16x64xf32>
    %c0_3 = arith.constant 0 : index
    %c0_4 = arith.constant 0 : index
    %3 = vector.load %arg3[%c0_3, %c0_4] : memref<1x64xf32, #tpu.memory_space<vmem>>, vector<1x64xf32>
    %4 = vector.broadcast %3 : vector<1x64xf32> to vector<16x64xf32>
    %5 = arith.addf %2, %4 : vector<16x64xf32>
    %cst_5 = arith.constant 0.000000e+00 : f32
    %6 = vector.broadcast %cst_5 : f32 to vector<16x64xf32>
    %7 = arith.maximumf %5, %6 : vector<16x64xf32>
    %8 = arith.truncf %7 : vector<16x64xf32> to vector<16x64xbf16>
    %c0_6 = arith.constant 0 : index
    %c0_7 = arith.constant 0 : index
    %9 = vector.load %arg4[%c0_6, %c0_7] : memref<64x32xbf16, #tpu.memory_space<vmem>>, vector<64x32xbf16>
    %cst_8 = arith.constant dense<0.000000e+00> : vector<16x32xf32>
    %10 = tpu.matmul %8, %9, %cst_8 {dimension_numbers = #tpu.dot_dimension_numbers<[1], [0], [0], [1], [0, 0, 1, 1], [], []>} : vector<16x64xbf16>, vector<64x32xbf16>, vector<16x32xf32> -> vector<16x32xf32>
    %c0_9 = arith.constant 0 : index
    %c0_10 = arith.constant 0 : index
    %11 = vector.load %arg5[%c0_9, %c0_10] : memref<1x32xf32, #tpu.memory_space<vmem>>, vector<1x32xf32>
    %12 = vector.broadcast %11 : vector<1x32xf32> to vector<16x32xf32>
    %13 = arith.addf %10, %12 : vector<16x32xf32>
    %cst_11 = arith.constant 0.000000e+00 : f32
    %14 = vector.broadcast %cst_11 : f32 to vector<16x32xf32>
    %15 = arith.maximumf %13, %14 : vector<16x32xf32>
    %16 = arith.truncf %15 : vector<16x32xf32> to vector<16x32xbf16>
    %c0_12 = arith.constant 0 : index
    %c0_13 = arith.constant 0 : index
    %17 = vector.load %arg6[%c0_12, %c0_13] : memref<32x128xbf16, #tpu.memory_space<vmem>>, vector<32x128xbf16>
    %cst_14 = arith.constant dense<0.000000e+00> : vector<16x128xf32>
    %18 = tpu.matmul %16, %17, %cst_14 {dimension_numbers = #tpu.dot_dimension_numbers<[1], [0], [0], [1], [0, 0, 1, 1], [], []>} : vector<16x32xbf16>, vector<32x128xbf16>, vector<16x128xf32> -> vector<16x128xf32>
    %c0_15 = arith.constant 0 : index
    %c0_16 = arith.constant 0 : index
    %19 = vector.load %arg7[%c0_15, %c0_16] : memref<1x128xf32, #tpu.memory_space<vmem>>, vector<1x128xf32>
    %20 = vector.broadcast %19 : vector<1x128xf32> to vector<16x128xf32>
    %21 = arith.addf %18, %20 : vector<16x128xf32>
    %c0_17 = arith.constant 0 : index
    %c0_18 = arith.constant 0 : index
    %22 = vector.load %arg8[%c0_17, %c0_18] : memref<16x128xf32, #tpu.memory_space<vmem>>, vector<16x128xf32>
    tpu.vector_store %arg8[%c0_17, %c0_18], %21 {strides = array<i32>} : memref<16x128xf32, #tpu.memory_space<vmem>>, vector<16x128xf32>,
    return
  }
  func.func @transform_0(%arg0: i32) -> (i32, i32) {
    %c0_i32 = arith.constant 0 : i32
    %c0_i32_0 = arith.constant 0 : i32
    return %arg0, %c0_i32 : i32, i32
  }
  func.func @transform_1(%arg0: i32) -> (i32, i32) {
    %c0_i32 = arith.constant 0 : i32
    %c0_i32_0 = arith.constant 0 : i32
    %c0_i32_1 = arith.constant 0 : i32
    return %c0_i32, %c0_i32_0 : i32, i32
  }
  func.func @transform_2(%arg0: i32) -> (i32, i32) {
    %c0_i32 = arith.constant 0 : i32
    %c0_i32_0 = arith.constant 0 : i32
    %c0_i32_1 = arith.constant 0 : i32
    return %c0_i32, %c0_i32_0 : i32, i32
  }
  func.func @transform_3(%arg0: i32) -> (i32, i32) {
    %c0_i32 = arith.constant 0 : i32
    %c0_i32_0 = arith.constant 0 : i32
    %c0_i32_1 = arith.constant 0 : i32
    return %c0_i32, %c0_i32_0 : i32, i32
  }
  func.func @transform_4(%arg0: i32) -> (i32, i32) {
    %c0_i32 = arith.constant 0 : i32
    %c0_i32_0 = arith.constant 0 : i32
    %c0_i32_1 = arith.constant 0 : i32
    return %c0_i32, %c0_i32_0 : i32, i32
  }
  func.func @transform_5(%arg0: i32) -> (i32, i32) {
    %c0_i32 = arith.constant 0 : i32
    %c0_i32_0 = arith.constant 0 : i32
    %c0_i32_1 = arith.constant 0 : i32
    return %c0_i32, %c0_i32_0 : i32, i32
  }
  func.func @transform_6(%arg0: i32) -> (i32, i32) {
    %c0_i32 = arith.constant 0 : i32
    %c0_i32_0 = arith.constant 0 : i32
    %c0_i32_1 = arith.constant 0 : i32
    return %c0_i32, %c0_i32_0 : i32, i32
  }
  func.func @transform_7(%arg0: i32) -> (i32, i32) {
    %c0_i32 = arith.constant 0 : i32
    %c0_i32_0 = arith.constant 0 : i32
    return %arg0, %c0_i32 : i32, i32
  }
}

</mosaic_0001>

<llo_original>
// kernel: tpu_custom_call.1
$region0: #{tpu_custom_call.1}
  #allocation0 [shape = 'u32[]', space=smem, size = 0x4, offset = 0x4, fixed_abs, tag = 'smem constant byte address 0x4 - core index']
  #allocation1 [shape = 'u32[144,128]{1,0:T(1,128)}', space=vmem, size = 0x12000, scoped, tag = 'internal scratch']
  %s0 = inlined_call_operand.vmem [shape: bf16[16,32], index: 0, kind: input, shape index: {}]
  %s1 = inlined_call_operand.vmem [shape: bf16[32,64], index: 1, kind: input, shape index: {}]
  %s2 = inlined_call_operand.vmem [shape: f32[1,64], index: 2, kind: input, shape index: {}]
  %s3 = inlined_call_operand.vmem [shape: bf16[64,32], index: 3, kind: input, shape index: {}]
  %s4 = inlined_call_operand.vmem [shape: f32[1,32], index: 4, kind: input, shape index: {}]
  %s5 = inlined_call_operand.vmem [shape: bf16[32,128], index: 5, kind: input, shape index: {}]
  %s6 = inlined_call_operand.vmem [shape: f32[1,128], index: 6, kind: input, shape index: {}]
  %s7 = inlined_call_operand.hbm [shape: f32[16,128], index: 7, kind: output, shape index: {}]
  %s8 = sld [smem:[#allocation0]]
  $region38: #{tpu_custom_call.1} parent=0
    _
  %s10 = ssub.s32 1, %s8
  %s11 = scalar_select 0, %s10, %s8
  $region1: #{tpu_custom_call.1} parent=0
    #allocation2 [shape = 'u8[8192]{0}', space=vmem, size = 0x2000, scoped, tag = 'output window, operand 0, single buffered']
    #allocation3 [shape = 's32[1]{0}', space=sflag, size = 0x4, scoped, tag = 'scoped memory for tpu_custom_call.1']
    %12 = vsyncpa [#allocation3], 0
    // Predicated region
    $region2: #{tpu_custom_call.1} parent=1 // pred_check
      _
    $region3: #{tpu_custom_call.1} parent=1 // pred_check_branch
      %14 = sbr.rel (0) target = $region5
    $region4: #{tpu_custom_call.1} parent=1 // pred_region
      _
    $region5: #{tpu_custom_call.1} parent=1 // pred_fallthru
      _
    // Predicated region
    $region6: #{tpu_custom_call.1} parent=1 // pred_check
      _
    $region7: #{tpu_custom_call.1} parent=1 // pred_check_branch
      %16 = sbr.rel (0) target = $region9
    $region8: #{tpu_custom_call.1} parent=1 // pred_region
      _
    $region9: #{tpu_custom_call.1} parent=1 // pred_fallthru
      _
    // Predicated region
    $region10: #{tpu_custom_call.1} parent=1 // pred_check
      _
    $region11: #{tpu_custom_call.1} parent=1 // pred_check_branch
      %18 = sbr.rel (0) target = $region13
    $region12: #{tpu_custom_call.1} parent=1 // pred_region
      _
    $region13: #{tpu_custom_call.1} parent=1 // pred_fallthru
      _
    // Predicated region
    $region14: #{tpu_custom_call.1} parent=1 // pred_check
      _
    $region15: #{tpu_custom_call.1} parent=1 // pred_check_branch
      %20 = sbr.rel (0) target = $region17
    $region16: #{tpu_custom_call.1} parent=1 // pred_region
      _
    $region17: #{tpu_custom_call.1} parent=1 // pred_fallthru
      _
    // Predicated region
    $region18: #{tpu_custom_call.1} parent=1 // pred_check
      _
    $region19: #{tpu_custom_call.1} parent=1 // pred_check_branch
      %22 = sbr.rel (0) target = $region21
    $region20: #{tpu_custom_call.1} parent=1 // pred_region
      _
    $region21: #{tpu_custom_call.1} parent=1 // pred_fallthru
      _
    // Predicated region
    $region22: #{tpu_custom_call.1} parent=1 // pred_check
      _
    $region23: #{tpu_custom_call.1} parent=1 // pred_check_branch
      %24 = sbr.rel (0) target = $region25
    $region24: #{tpu_custom_call.1} parent=1 // pred_region
      _
    $region25: #{tpu_custom_call.1} parent=1 // pred_fallthru
      _
    // Predicated region
    $region26: #{tpu_custom_call.1} parent=1 // pred_check
      _
    $region27: #{tpu_custom_call.1} parent=1 // pred_check_branch
      %26 = sbr.rel (0) target = $region29
    $region28: #{tpu_custom_call.1} parent=1 // pred_region
      _
    $region29: #{tpu_custom_call.1} parent=1 // pred_fallthru
      _
    %v28 = vld [vmem:[%s0] sm:$0xf]
    %v29 = vld [vmem:[%s0 + $0x4] sm:$0xf]
    %v30 = vld [vmem:[%s1] sm:$0xf]
    %v31 = vld [vmem:[%s1 + $0x4] sm:$0xf]
    %v32 = vld [vmem:[%s1 + $0x8] sm:$0xf]
    %v33 = vld [vmem:[%s1 + $0xc] sm:$0xf]
    %v34 = vld [vmem:[%s2] sm:$0x1]
    %v36 = vlaneseq
    %v37 = vshrl.u32 %v36, 7
    %v38 = vsub.s32 0, %v37
    %v39 = vrot.slane %v34, %v38
    %v43 = vunpack.c.l.b16 %v28
    %v44 = vunpack.c.l.b16 %v29
    %v45 = vpack.c.b16 %v44, %v43
    %v50 = vunpack.c.l.b16 %v30
    %v51 = vunpack.c.l.b16 %v31
    %v52 = vunpack.c.l.b16 %v32
    %v53 = vunpack.c.l.b16 %v33
    %v54 = vpack.c.b16 %v51, %v50
    %v55 = vpack.c.b16 %v53, %v52
    %vm58 = vcmask 261120
    %v60 = vsel %vm58, %v45, 0
    %62 = vmatprep.subr.bf16.mxu0 0
    %63 = vmatpush1.bf16.msra.mxu0 %v54
    %64 = vmatprep.subr.bf16.mxu0 0
    %65 = vmatpush1.bf16.msra.mxu0 %v55
    %66 = vmatprep.subr.bf16.mxu0 0
    %67 = vmatpush1.bf16.msra.mxu0 0
    %68 = vmatprep.subr.bf16.mxu0 0
    %69 = vmatpush1.bf16.msra.mxu0 0
    %70 = vmatprep.subr.bf16.mxu0 0
    %71 = vmatpush1.bf16.msra.mxu0 0
    %72 = vmatprep.subr.bf16.mxu0 0
    %73 = vmatpush1.bf16.msra.mxu0 0
    %74 = vmatprep.subr.bf16.mxu0 0
    %75 = vmatpush1.bf16.msra.mxu0 0
    %76 = vmatprep.subr.bf16.mxu0 0
    %77 = vmatpush1.bf16.msra.mxu0 0
    %78 = vmatprep.subr.bf16.mxu0 0
    %79 = vmatpush1.bf16.msra.mxu0 0
    %80 = vmatprep.subr.bf16.mxu0 0
    %81 = vmatpush1.bf16.msra.mxu0 0
    %82 = vmatprep.subr.bf16.mxu0 0
    %83 = vmatpush1.bf16.msra.mxu0 0
    %84 = vmatprep.subr.bf16.mxu0 0
    %85 = vmatpush1.bf16.msra.mxu0 0
    %86 = vmatprep.subr.bf16.mxu0 0
    %87 = vmatpush1.bf16.msra.mxu0 0
    %88 = vmatprep.subr.bf16.mxu0 0
    %89 = vmatpush1.bf16.msra.mxu0 0
    %90 = vmatprep.subr.bf16.mxu0 0
    %91 = vmatpush1.bf16.msra.mxu0 0
    %92 = vmatprep.subr.bf16.mxu0 0
    %93 = vmatpush1.bf16.msra.mxu0 0
    %94 = vmatprep.mubr.bf16.mxu0 0
    %95 = vmatmul.mubr.bf16.gmra.mrb[0].mxu0 %v60
    %v96 = vpop.f32.mrb[0].mxu0
    %v97 = vadd.f32 %v39, %v96
    %v98 = vpop.f32.mrb[0].mxu0
    %v99 = vpop.f32.mrb[0].mxu0
    %v100 = vadd.f32 %v39, %v99
    %v101 = vpop.f32.mrb[0].mxu0
    %102 = vdwg.mxu0
    %v103 = vmax.f32 %v97, 0.0
    %v104 = vmax.f32 %v100, 0.0
    %v105 = vpack.c.bf16 %v104, %v103
    %v106 = vld [vmem:[%s3] sm:$0xf]
    %v107 = vld [vmem:[%s3 + $0x4] sm:$0xf]
    %v108 = vld [vmem:[%s3 + $0x8] sm:$0xf]
    %v109 = vld [vmem:[%s3 + $0xc] sm:$0xf]
    %v110 = vld [vmem:[%s3 + $0x10] sm:$0xf]
    %v111 = vld [vmem:[%s3 + $0x14] sm:$0xf]
    %v112 = vld [vmem:[%s3 + $0x18] sm:$0xf]
    %v113 = vld [vmem:[%s3 + $0x1c] sm:$0xf]
    %v114 = vld [vmem:[%s4] sm:$0x1]
    %v116 = vlaneseq
    %v117 = vshrl.u32 %v116, 7
    %v118 = vsub.s32 0, %v117
    %v119 = vrot.slane %v114, %v118
    %v129 = vunpack.c.l.b16 %v106
    %v130 = vunpack.c.l.b16 %v107
    %v131 = vunpack.c.l.b16 %v108
    %v132 = vunpack.c.l.b16 %v109
    %v133 = vunpack.c.l.b16 %v110
    %v134 = vunpack.c.l.b16 %v111
    %v135 = vunpack.c.l.b16 %v112
    %v136 = vunpack.c.l.b16 %v113
    %v137 = vpack.c.b16 %v130, %v129
    %v138 = vpack.c.b16 %v132, %v131
    %v139 = vpack.c.b16 %v134, %v133
    %v140 = vpack.c.b16 %v136, %v135
    %vm145 = vcmask 523264
    %v147 = vsel %vm145, %v105, 0
    %149 = vmatprep.subr.bf16.mxu0 0
    %150 = vmatpush1.bf16.msra.mxu0 %v137
    %151 = vmatprep.subr.bf16.mxu0 0
    %152 = vmatpush1.bf16.msra.mxu0 %v138
    %153 = vmatprep.subr.bf16.mxu0 0
    %154 = vmatpush1.bf16.msra.mxu0 %v139
    %155 = vmatprep.subr.bf16.mxu0 0
    %156 = vmatpush1.bf16.msra.mxu0 %v140
    %157 = vmatprep.subr.bf16.mxu0 0
    %158 = vmatpush1.bf16.msra.mxu0 0
    %159 = vmatprep.subr.bf16.mxu0 0
    %160 = vmatpush1.bf16.msra.mxu0 0
    %161 = vmatprep.subr.bf16.mxu0 0
    %162 = vmatpush1.bf16.msra.mxu0 0
    %163 = vmatprep.subr.bf16.mxu0 0
    %164 = vmatpush1.bf16.msra.mxu0 0
    %165 = vmatprep.subr.bf16.mxu0 0
    %166 = vmatpush1.bf16.msra.mxu0 0
    %167 = vmatprep.subr.bf16.mxu0 0
    %168 = vmatpush1.bf16.msra.mxu0 0
    %169 = vmatprep.subr.bf16.mxu0 0
    %170 = vmatpush1.bf16.msra.mxu0 0
    %171 = vmatprep.subr.bf16.mxu0 0
    %172 = vmatpush1.bf16.msra.mxu0 0
    %173 = vmatprep.subr.bf16.mxu0 0
    %174 = vmatpush1.bf16.msra.mxu0 0
    %175 = vmatprep.subr.bf16.mxu0 0
    %176 = vmatpush1.bf16.msra.mxu0 0
    %177 = vmatprep.subr.bf16.mxu0 0
    %178 = vmatpush1.bf16.msra.mxu0 0
    %179 = vmatprep.subr.bf16.mxu0 0
    %180 = vmatpush1.bf16.msra.mxu0 0
    %181 = vmatprep.mubr.bf16.mxu0 0
    %182 = vmatmul.mubr.bf16.gmra.mrb[0].mxu0 %v147
    %v183 = vpop.f32.mrb[0].mxu0
    %v184 = vadd.f32 %v119, %v183
    %v185 = vpop.f32.mrb[0].mxu0
    %v186 = vpop.f32.mrb[0].mxu0
    %v187 = vadd.f32 %v119, %v186
    %v188 = vpop.f32.mrb[0].mxu0
    %189 = vdwg.mxu0
    %v190 = vmax.f32 %v184, 0.0
    %v191 = vmax.f32 %v187, 0.0
    %v192 = vpack.c.bf16 %v191, %v190
    %v193 = vld [vmem:[%s5] sm:$0xf]
    %v194 = vld [vmem:[%s5 + $0x4] sm:$0xf]
    %v195 = vld [vmem:[%s5 + $0x8] sm:$0xf]
    %v196 = vld [vmem:[%s5 + $0xc] sm:$0xf]
    %v197 = vld [vmem:[%s6] sm:$0x1]
    %v199 = vlaneseq
    %v200 = vshrl.u32 %v199, 7
    %v201 = vsub.s32 0, %v200
    %v202 = vrot.slane %v197, %v201
    %v208 = vunpack.c.l.b16 %v193
    %v209 = vunpack.c.l.b16 %v194
    %v210 = vunpack.c.l.b16 %v195
    %v211 = vunpack.c.l.b16 %v196
    %v212 = vpack.c.b16 %v209, %v208
    %v213 = vpack.c.b16 %v211, %v210
    %v217 = vsel %vm58, %v192, 0
    %219 = vmatprep.subr.bf16.mxu0 0
    %220 = vmatpush1.bf16.msra.mxu0 %v212
    %221 = vmatprep.subr.bf16.mxu0 0
    %222 = vmatpush1.bf16.msra.mxu0 %v213
    %223 = vmatprep.subr.bf16.mxu0 0
    %224 = vmatpush1.bf16.msra.mxu0 0
    %225 = vmatprep.subr.bf16.mxu0 0
    %226 = vmatpush1.bf16.msra.mxu0 0
    %227 = vmatprep.subr.bf16.mxu0 0
    %228 = vmatpush1.bf16.msra.mxu0 0
    %229 = vmatprep.subr.bf16.mxu0 0
    %230 = vmatpush1.bf16.msra.mxu0 0
    %231 = vmatprep.subr.bf16.mxu0 0
    %232 = vmatpush1.bf16.msra.mxu0 0
    %233 = vmatprep.subr.bf16.mxu0 0
    %234 = vmatpush1.bf16.msra.mxu0 0
    %235 = vmatprep.subr.bf16.mxu0 0
    %236 = vmatpush1.bf16.msra.mxu0 0
    %237 = vmatprep.subr.bf16.mxu0 0
    %238 = vmatpush1.bf16.msra.mxu0 0
    %239 = vmatprep.subr.bf16.mxu0 0
    %240 = vmatpush1.bf16.msra.mxu0 0
    %241 = vmatprep.subr.bf16.mxu0 0
    %242 = vmatpush1.bf16.msra.mxu0 0
    %243 = vmatprep.subr.bf16.mxu0 0
    %244 = vmatpush1.bf16.msra.mxu0 0
    %245 = vmatprep.subr.bf16.mxu0 0
    %246 = vmatpush1.bf16.msra.mxu0 0
    %247 = vmatprep.subr.bf16.mxu0 0
    %248 = vmatpush1.bf16.msra.mxu0 0
    %249 = vmatprep.subr.bf16.mxu0 0
    %250 = vmatpush1.bf16.msra.mxu0 0
    %251 = vmatprep.mubr.bf16.mxu0 0
    %252 = vmatmul.mubr.bf16.gmra.mrb[0].mxu0 %v217
    %v253 = vpop.f32.mrb[0].mxu0
    %v254 = vadd.f32 %v202, %v253
    %v255 = vpop.f32.mrb[0].mxu0
    %v256 = vpop.f32.mrb[0].mxu0
    %v257 = vadd.f32 %v202, %v256
    %v258 = vpop.f32.mrb[0].mxu0
    %259 = vdwg.mxu0
    %260 = vst [vmem:[#allocation2] sm:$0xff] %v254
    %261 = vst [vmem:[#allocation2 + $0x8] sm:$0xff] %v257
    // Predicated region
    $region30: #{tpu_custom_call.1} parent=1 // pred_check
      _
    $region31: #{tpu_custom_call.1} parent=1 // pred_check_branch
      %263 = sbr.rel (0) target = $region33
    $region32: #{tpu_custom_call.1} parent=1 // pred_region
      %s265 = ssub.s32 256, 256
      %266 = vsyncadd [#allocation3], %s265
      %s267 = sshll.u32 [#allocation2], 4
      %s268 = int_to_ptr.vmem [resolvable:$true] %s267
      %273 = dma.vmem_to_hbm [thread:$0]  %s268, 256, %s7, [#allocation3], 128, 128, 8
    $region33: #{tpu_custom_call.1} parent=1 // pred_fallthru
      _
    // Predicated region
    $region34: #{tpu_custom_call.1} parent=1 // pred_check
      _
    $region35: #{tpu_custom_call.1} parent=1 // pred_check_branch
      %275 = sbr.rel (0) target = $region37
    $region36: #{tpu_custom_call.1} parent=1 // pred_region
      %276 = dma.done [#allocation3], 256
    $region37: #{tpu_custom_call.1} parent=1 // pred_fallthru
      _
    %277 = vsyncpa [#allocation3], 1

</llo_original>
